<compile_context>
chip_gen: v5e
topology: v5e:2x2
jax: 0.10.0
libtpu: 0.0.40
codegen_flags: <defaults>
</compile_context>

<pallas_src>
import math

import jax
import jax.numpy as jnp
from jax.experimental import pallas as pl
from jax.experimental.pallas import tpu as pltpu


def _round_up(n, m):
    return ((n + m - 1) // m) * m


def _row_group(hidden_dim):
    # Batch rows packed per sublane row.  Chosen so g*hidden is a multiple of
    # 128 (lane-dense intermediates) while bounding the g-fold MXU inflation
    # of the block-diagonal layer-2 matmul (g <= 8 keeps it under the HBM time
    # on v5e/v6e/v7x).  hidden=32 -> g=4.
    return max(1, min(8, 128 // math.gcd(hidden_dim, 128)))


# --------------------------------------------------------------------------- #
# Kernel
# --------------------------------------------------------------------------- #
def _mlp_kernel(x_ref, w1_ref, b1_ref, w2_ref, b2_ref, w3_ref, b3_ref, o_ref):
    # x_ref: (Rt, g*D) float32 — g batch rows per sublane row (lane-dense tile,
    # obtained by a free row-major reshape in the wrapper; no HBM relayout).
    xb = x_ref[...].astype(jnp.bfloat16)                 # cast in-kernel (VPU)

    # Layer 1 (block-diagonal): (Rt, g*D) @ (g*D, g*H) -> (Rt, g*H), f32 acc.
    h = jnp.dot(xb, w1_ref[...], preferred_element_type=jnp.float32)
    h = jnp.maximum(h + b1_ref[...], 0.0)
    # Dropout(p=0.2): identity at inference.
    h = h.astype(jnp.bfloat16)

    # Layer 2 (block-diagonal): (Rt, g*H) @ (g*H, g*H) -> (Rt, g*H).
    h = jnp.dot(h, w2_ref[...], preferred_element_type=jnp.float32)
    h = jnp.maximum(h + b2_ref[...], 0.0)

    # Layer 3 (block-diagonal column): (Rt, g*H) @ (g*H, g) -> (Rt, g).
    out = jnp.dot(h.astype(jnp.bfloat16), w3_ref[...],
                  preferred_element_type=jnp.float32)
    o_ref[...] = (out + b3_ref[0]).astype(o_ref.dtype)


# --------------------------------------------------------------------------- #
# Parameter handling
# --------------------------------------------------------------------------- #
def init_params(key, input_dim, hidden_dim=32):
    """nn.Linear-style U(-1/sqrt(fan_in), +1/sqrt(fan_in)) init, PyTorch layout."""
    ks = jax.random.split(key, 6)

    def lin(kw, kb, fan_in, fan_out):
        bound = 1.0 / math.sqrt(fan_in)
        w = jax.random.uniform(kw, (fan_out, fan_in), jnp.float32, -bound, bound)
        b = jax.random.uniform(kb, (fan_out,), jnp.float32, -bound, bound)
        return w, b

    w1, b1 = lin(ks[0], ks[1], input_dim, hidden_dim)
    w2, b2 = lin(ks[2], ks[3], hidden_dim, hidden_dim)
    w3, b3 = lin(ks[4], ks[5], hidden_dim, 1)
    return {"w1": w1, "b1": b1, "w2": w2, "b2": b2, "w3": w3, "b3": b3}


def pack_params(params, g):
    """PyTorch-layout params -> fused-kernel params.

    Weights become block-diagonal (g copies of each Linear on the diagonal) so
    every layer is a single native MXU matmul on the row-packed layout; the
    zero blocks contribute exact zeros, so the math is identical to the plain
    per-row MLP.  Matmul operands are bf16; biases stay f32.
    """
    H = params["w1"].shape[0]
    eye = jnp.eye(g, dtype=jnp.float32)
    return {
        "W1": jnp.kron(eye, params["w1"].T).astype(jnp.bfloat16),   # (g*D, g*H)
        "B1": jnp.tile(params["b1"].reshape(1, H), (1, g)),          # (1, g*H) f32
        "W2": jnp.kron(eye, params["w2"].T).astype(jnp.bfloat16),   # (g*H, g*H)
        "B2": jnp.tile(params["b2"].reshape(1, H), (1, g)),          # (1, g*H) f32
        "W3": jnp.kron(eye, params["w3"].T).astype(jnp.bfloat16),   # (g*H, g)
        "b3": params["b3"].reshape(1).astype(jnp.float32),           # (1,) SMEM scalar
    }


# --------------------------------------------------------------------------- #
# Forward
# --------------------------------------------------------------------------- #
def stock_mlp_forward(x, params, *, block_b=16384):
    """Fused StockMLP forward (inference).  x: (B, D) float.  Returns (B, 1) f32.

    block_b = batch rows per grid step (sweep 8K-64K).  At the default 16384
    the per-step footprint is ~20 MiB of VMEM and ~1.1 MiB of HBM traffic, so
    the fixed ~0.35us grid-step overhead is well amortised on all generations.
    """
    B, D = x.shape
    H = params["w1"].shape[0]
    g = _row_group(H)

    # Tiny (O(g^2 * H^2)) host-side prep; hoist out of the call if looping.
    kp = pack_params(params, g)

    # Free relayout: (B, D) -> (B/g, g*D) is a row-major bitcast (zero HBM
    # cost) whenever B % g == 0; only a ragged-by-<g batch pays a pad copy.
    Bp = _round_up(max(B, 1), g)
    if Bp != B:
        x = jnp.pad(x, ((0, Bp - B), (0, 0)))
    R = Bp // g
    xr = x.reshape(R, g * D)

    # Batch tiling: >= 2 grid steps for moderate/large batches (feeds both v7x
    # TensorCores via the "parallel" axis), capped by block_b.  A ragged last
    # tile relies on Pallas edge masking — rows are fully independent, so OOB
    # garbage only ever lands in masked-off output positions.
    cap_r = max(16, _round_up(block_b, 128) // g)
    if R <= 32:                               # tiny batch: single resident step
        eff_r = R
    else:
        eff_r = min(cap_r, _round_up(pl.cdiv(R, 2), 16))
    grid_n = pl.cdiv(R, eff_r)

    gD, gH = g * D, g * H
    in_specs = [
        pl.BlockSpec((eff_r, gD), lambda i: (i, 0)),          # packed x tile
        pl.BlockSpec((gD, gH), lambda i: (0, 0)),             # W1 (VMEM-resident)
        pl.BlockSpec((1, gH), lambda i: (0, 0)),              # B1
        pl.BlockSpec((gH, gH), lambda i: (0, 0)),             # W2
        pl.BlockSpec((1, gH), lambda i: (0, 0)),              # B2
        pl.BlockSpec((gH, g), lambda i: (0, 0)),              # W3
        pl.BlockSpec(memory_space=pltpu.MemorySpace.SMEM),    # b3 scalar
    ]
    out_spec = pl.BlockSpec((eff_r, g), lambda i: (i, 0))

    out = pl.pallas_call(
        _mlp_kernel,
        out_shape=jax.ShapeDtypeStruct((R, g), jnp.float32),
        grid_spec=pltpu.PrefetchScalarGridSpec(
            num_scalar_prefetch=0,
            grid=(grid_n,),
            in_specs=in_specs,
            out_specs=out_spec,
        ),
        compiler_params=pltpu.CompilerParams(
            dimension_semantics=("parallel",),     # shard batch steps across TCs (v7x)
            vmem_limit_bytes=48 * 1024 * 1024,     # sweep headroom, < v7x 64 MiB physical
        ),
    )(xr, kp["W1"], kp["B1"], kp["W2"], kp["B2"], kp["W3"], kp["b3"])

    # (R, g) -> (B, 1): free row-major reshape, slice off any pad rows.
    return out.reshape(-1, 1)[:B]


# --------------------------------------------------------------------------- #
# Plain-JAX reference mirroring the kernel numerics (bf16 operands, f32 acc)
# --------------------------------------------------------------------------- #
def _reference_forward(x, p):
    f32, bf16 = jnp.float32, jnp.bfloat16
    hp = jax.lax.Precision.HIGHEST

    def mm(a, w):
        return jnp.dot(a.astype(bf16).astype(f32),
                       w.astype(bf16).astype(f32), precision=hp)

    h1 = jnp.maximum(mm(x, p["w1"].T) + p["b1"], 0.0)
    h2 = jnp.maximum(mm(h1, p["w2"].T) + p["b2"], 0.0)
    return mm(h2, p["w3"].T) + p["b3"]                     # (B, 1)


if __name__ == "__main__":
    key = jax.random.PRNGKey(0)
    k1, k2, k3, kp = jax.random.split(key, 4)

    D, H = 16, 32
    params = init_params(kp, D, H)

    # Tiny batch consistent with the module (batch=8, input_dim=16, hidden=32):
    # single resident grid step.
    x_a = jax.random.normal(k1, (8, D), dtype=jnp.float32)
    out_a = jax.block_until_ready(stock_mlp_forward(x_a, params))
    assert out_a.shape == (8, 1)
    assert jnp.allclose(out_a, _reference_forward(x_a, params),
                        atol=1e-3, rtol=1e-3), "small-batch mismatch"

    # Multi-step "parallel" path with a ragged last tile and zero wrapper
    # copies (B % 4 == 0); small block_b forces several grid steps.
    x_b = jax.random.normal(k2, (300, D), dtype=jnp.float32)
    out_b = jax.block_until_ready(stock_mlp_forward(x_b, params, block_b=128))
    assert out_b.shape == (300, 1)
    assert jnp.allclose(out_b, _reference_forward(x_b, params),
                        atol=1e-3, rtol=1e-3), "tiled-batch mismatch"

    # Batch not divisible by the packing factor (exercises the pad fallback).
    x_c = jax.random.normal(k3, (203, D), dtype=jnp.float32)
    out_c = jax.block_until_ready(stock_mlp_forward(x_c, params, block_b=128))
    assert out_c.shape == (203, 1)
    assert jnp.allclose(out_c, _reference_forward(x_c, params),
                        atol=1e-3, rtol=1e-3), "unaligned-batch mismatch"

    print("KERNEL_OK")
</pallas_src>

<mosaic_0001>
module attributes {stable_mosaic.version = 11 : i64} {
  func.func @_mlp_kernel(%arg0: i32, %arg1: memref<2x64xf32, #tpu.memory_space<vmem>>, %arg2: memref<64x128xbf16, #tpu.memory_space<vmem>>, %arg3: memref<1x128xf32, #tpu.memory_space<vmem>>, %arg4: memref<128x128xbf16, #tpu.memory_space<vmem>>, %arg5: memref<1x128xf32, #tpu.memory_space<vmem>>, %arg6: memref<128x4xbf16, #tpu.memory_space<vmem>>, %arg7: memref<1xf32, #tpu.memory_space<smem>>, %arg8: memref<2x4xf32, #tpu.memory_space<vmem>>) attributes {dimension_semantics = [#tpu.dimension_semantics<parallel>], iteration_bounds = array<i64: 1>, scalar_prefetch = 0 : i64, scratch_operands = 0 : i64, tpu.core_type = #tpu.core_type<tc>, window_params = [{transform_indices = @transform_0, window_bounds = array<i64: 2, 64>}, {pipeline_mode = #tpu.pipeline_mode<synchronous>, transform_indices = @transform_1, window_bounds = array<i64: 64, 128>}, {pipeline_mode = #tpu.pipeline_mode<synchronous>, transform_indices = @transform_2, window_bounds = array<i64: 1, 128>}, {pipeline_mode = #tpu.pipeline_mode<synchronous>, transform_indices = @transform_3, window_bounds = array<i64: 128, 128>}, {pipeline_mode = #tpu.pipeline_mode<synchronous>, transform_indices = @transform_4, window_bounds = array<i64: 1, 128>}, {pipeline_mode = #tpu.pipeline_mode<synchronous>, transform_indices = @transform_5, window_bounds = array<i64: 128, 4>}, {transform_indices = @transform_6, window_bounds = array<i64: 1>}, {transform_indices = @transform_7, window_bounds = array<i64: 2, 4>}]} {
    %c0 = arith.constant 0 : index
    %c0_0 = arith.constant 0 : index
    %0 = vector.load %arg1[%c0, %c0_0] : memref<2x64xf32, #tpu.memory_space<vmem>>, vector<2x64xf32>
    %1 = arith.truncf %0 : vector<2x64xf32> to vector<2x64xbf16>
    %c0_1 = arith.constant 0 : index
    %c0_2 = arith.constant 0 : index
    %2 = vector.load %arg2[%c0_1, %c0_2] : memref<64x128xbf16, #tpu.memory_space<vmem>>, vector<64x128xbf16>
    %cst = arith.constant dense<0.000000e+00> : vector<2x128xf32>
    %3 = tpu.matmul %1, %2, %cst {dimension_numbers = #tpu.dot_dimension_numbers<[1], [0], [0], [1], [0, 0, 1, 1], [], []>} : vector<2x64xbf16>, vector<64x128xbf16>, vector<2x128xf32> -> vector<2x128xf32>
    %c0_3 = arith.constant 0 : index
    %c0_4 = arith.constant 0 : index
    %4 = vector.load %arg3[%c0_3, %c0_4] : memref<1x128xf32, #tpu.memory_space<vmem>>, vector<1x128xf32>
    %5 = vector.broadcast %4 : vector<1x128xf32> to vector<2x128xf32>
    %6 = arith.addf %3, %5 : vector<2x128xf32>
    %cst_5 = arith.constant 0.000000e+00 : f32
    %7 = vector.broadcast %cst_5 : f32 to vector<2x128xf32>
    %8 = arith.maximumf %6, %7 : vector<2x128xf32>
    %9 = arith.truncf %8 : vector<2x128xf32> to vector<2x128xbf16>
    %c0_6 = arith.constant 0 : index
    %c0_7 = arith.constant 0 : index
    %10 = vector.load %arg4[%c0_6, %c0_7] : memref<128x128xbf16, #tpu.memory_space<vmem>>, vector<128x128xbf16>
    %cst_8 = arith.constant dense<0.000000e+00> : vector<2x128xf32>
    %11 = tpu.matmul %9, %10, %cst_8 {dimension_numbers = #tpu.dot_dimension_numbers<[1], [0], [0], [1], [0, 0, 1, 1], [], []>} : vector<2x128xbf16>, vector<128x128xbf16>, vector<2x128xf32> -> vector<2x128xf32>
    %c0_9 = arith.constant 0 : index
    %c0_10 = arith.constant 0 : index
    %12 = vector.load %arg5[%c0_9, %c0_10] : memref<1x128xf32, #tpu.memory_space<vmem>>, vector<1x128xf32>
    %13 = vector.broadcast %12 : vector<1x128xf32> to vector<2x128xf32>
    %14 = arith.addf %11, %13 : vector<2x128xf32>
    %cst_11 = arith.constant 0.000000e+00 : f32
    %15 = vector.broadcast %cst_11 : f32 to vector<2x128xf32>
    %16 = arith.maximumf %14, %15 : vector<2x128xf32>
    %17 = arith.truncf %16 : vector<2x128xf32> to vector<2x128xbf16>
    %c0_12 = arith.constant 0 : index
    %c0_13 = arith.constant 0 : index
    %18 = vector.load %arg6[%c0_12, %c0_13] : memref<128x4xbf16, #tpu.memory_space<vmem>>, vector<128x4xbf16>
    %cst_14 = arith.constant dense<0.000000e+00> : vector<2x4xf32>
    %19 = tpu.matmul %17, %18, %cst_14 {dimension_numbers = #tpu.dot_dimension_numbers<[1], [0], [0], [1], [0, 0, 1, 1], [], []>} : vector<2x128xbf16>, vector<128x4xbf16>, vector<2x4xf32> -> vector<2x4xf32>
    %c0_15 = arith.constant 0 : index
    %20 = memref.load %arg7[%c0_15] : memref<1xf32, #tpu.memory_space<smem>>
    %21 = vector.broadcast %20 : f32 to vector<2x4xf32>
    %22 = arith.addf %19, %21 : vector<2x4xf32>
    %c0_16 = arith.constant 0 : index
    %c0_17 = arith.constant 0 : index
    %23 = vector.load %arg8[%c0_16, %c0_17] : memref<2x4xf32, #tpu.memory_space<vmem>>, vector<2x4xf32>
    tpu.vector_store %arg8[%c0_16, %c0_17], %22 {strides = array<i32>} : memref<2x4xf32, #tpu.memory_space<vmem>>, vector<2x4xf32>,
    return
  }
  func.func @transform_0(%arg0: i32) -> (i32, i32) {
    %c0_i32 = arith.constant 0 : i32
    %c0_i32_0 = arith.constant 0 : i32
    return %arg0, %c0_i32 : i32, i32
  }
  func.func @transform_1(%arg0: i32) -> (i32, i32) {
    %c0_i32 = arith.constant 0 : i32
    %c0_i32_0 = arith.constant 0 : i32
    %c0_i32_1 = arith.constant 0 : i32
    return %c0_i32, %c0_i32_0 : i32, i32
  }
  func.func @transform_2(%arg0: i32) -> (i32, i32) {
    %c0_i32 = arith.constant 0 : i32
    %c0_i32_0 = arith.constant 0 : i32
    %c0_i32_1 = arith.constant 0 : i32
    return %c0_i32, %c0_i32_0 : i32, i32
  }
  func.func @transform_3(%arg0: i32) -> (i32, i32) {
    %c0_i32 = arith.constant 0 : i32
    %c0_i32_0 = arith.constant 0 : i32
    %c0_i32_1 = arith.constant 0 : i32
    return %c0_i32, %c0_i32_0 : i32, i32
  }
  func.func @transform_4(%arg0: i32) -> (i32, i32) {
    %c0_i32 = arith.constant 0 : i32
    %c0_i32_0 = arith.constant 0 : i32
    %c0_i32_1 = arith.constant 0 : i32
    return %c0_i32, %c0_i32_0 : i32, i32
  }
  func.func @transform_5(%arg0: i32) -> (i32, i32) {
    %c0_i32 = arith.constant 0 : i32
    %c0_i32_0 = arith.constant 0 : i32
    %c0_i32_1 = arith.constant 0 : i32
    return %c0_i32, %c0_i32_0 : i32, i32
  }
  func.func @transform_6(%arg0: i32) -> i32 {
    %c0_i32 = arith.constant 0 : i32
    %c0_i32_0 = arith.constant 0 : i32
    return %c0_i32 : i32
  }
  func.func @transform_7(%arg0: i32) -> (i32, i32) {
    %c0_i32 = arith.constant 0 : i32
    %c0_i32_0 = arith.constant 0 : i32
    return %arg0, %c0_i32 : i32, i32
  }
}

</mosaic_0001>

<llo_original>
// kernel: tpu_custom_call.1
$region0: #{tpu_custom_call.1}
  #allocation0 [shape = 'u32[]', space=smem, size = 0x4, offset = 0x4, fixed_abs, tag = 'smem constant byte address 0x4 - core index']
  #allocation1 [shape = 'u32[72,128]{1,0:T(1,128)}', space=vmem, size = 0x9000, scoped, tag = 'internal scratch']
  #allocation2 [shape = 'f32[1]{0:T(128)S(6)}', space=smem, size = 0x200, scoped, tag = 'scoped memory for tpu_custom_call.1']
  %s0 = inlined_call_operand.vmem [shape: f32[2,64], index: 0, kind: input, shape index: {}]
  %s1 = inlined_call_operand.hbm [shape: bf16[64,128], index: 1, kind: input, shape index: {}]
  %s2 = inlined_call_operand.vmem [shape: f32[1,128], index: 2, kind: input, shape index: {}]
  %s3 = inlined_call_operand.vmem [shape: bf16[128,128], index: 3, kind: input, shape index: {}]
  %s4 = inlined_call_operand.vmem [shape: f32[1,128], index: 4, kind: input, shape index: {}]
  %s5 = inlined_call_operand.vmem [shape: bf16[128,4], index: 5, kind: input, shape index: {}]
  %s6 = inlined_call_operand.<no memory space> [shape: f32[1], index: 6, kind: input, shape index: {}]
  %s7 = inlined_call_operand.hbm [shape: f32[2,4], index: 7, kind: output, shape index: {}]
  %s8 = sld [smem:[#allocation0]]
  $region42: #{tpu_custom_call.1} parent=0
    _
  %s10 = ssub.s32 1, %s8
  %s11 = scalar_select 0, %s10, %s8
  %12 = sst [smem:[#allocation2]] %s6
  $region1: #{tpu_custom_call.1} parent=0
    #allocation3 [shape = 'u8[16384]{0}', space=vmem, size = 0x4000, scoped, tag = 'input window, operand 1, single buffered']
    #allocation4 [shape = 's32[1]{0}', space=sflag, size = 0x4, scoped, tag = 'scoped memory for tpu_custom_call.1']
    #allocation5 [shape = 's32[1]{0}', space=sflag, size = 0x4, scoped, tag = 'scoped memory for tpu_custom_call.1']
    #allocation6 [shape = 'u8[1024]{0}', space=vmem, size = 0x400, scoped, tag = 'output window, operand 0, single buffered']
    %13 = vsyncpa [#allocation4], 0
    %14 = vsyncpa [#allocation5], 0
    // Predicated region
    $region2: #{tpu_custom_call.1} parent=1 // pred_check
      _
    $region3: #{tpu_custom_call.1} parent=1 // pred_check_branch
      %16 = sbr.rel (0) target = $region5
    $region4: #{tpu_custom_call.1} parent=1 // pred_region
      _
    $region5: #{tpu_custom_call.1} parent=1 // pred_fallthru
      _
    // Predicated region
    $region6: #{tpu_custom_call.1} parent=1 // pred_check
      _
    $region7: #{tpu_custom_call.1} parent=1 // pred_check_branch
      %18 = sbr.rel (0) target = $region9
    $region8: #{tpu_custom_call.1} parent=1 // pred_region
      %20 = vsyncadd [#allocation4], 0
      %s21 = sshll.u32 %s1, 4
      %s22 = int_to_ptr.hbm [resolvable:$true] %s21
      %s23 = sshll.u32 [#allocation3], 4
      %s24 = int_to_ptr.vmem [resolvable:$true] %s23
      %29 = dma.hbm_to_vmem [thread:$0]  %s22, 512, %s24, [#allocation4], 64, 64, 4
    $region9: #{tpu_custom_call.1} parent=1 // pred_fallthru
      _
    // Predicated region
    $region10: #{tpu_custom_call.1} parent=1 // pred_check
      _
    $region11: #{tpu_custom_call.1} parent=1 // pred_check_branch
      %31 = sbr.rel (0) target = $region13
    $region12: #{tpu_custom_call.1} parent=1 // pred_region
      _
    $region13: #{tpu_custom_call.1} parent=1 // pred_fallthru
      _
    // Predicated region
    $region14: #{tpu_custom_call.1} parent=1 // pred_check
      _
    $region15: #{tpu_custom_call.1} parent=1 // pred_check_branch
      %33 = sbr.rel (0) target = $region17
    $region16: #{tpu_custom_call.1} parent=1 // pred_region
      _
    $region17: #{tpu_custom_call.1} parent=1 // pred_fallthru
      _
    // Predicated region
    $region18: #{tpu_custom_call.1} parent=1 // pred_check
      _
    $region19: #{tpu_custom_call.1} parent=1 // pred_check_branch
      %35 = sbr.rel (0) target = $region21
    $region20: #{tpu_custom_call.1} parent=1 // pred_region
      _
    $region21: #{tpu_custom_call.1} parent=1 // pred_fallthru
      _
    // Predicated region
    $region22: #{tpu_custom_call.1} parent=1 // pred_check
      _
    $region23: #{tpu_custom_call.1} parent=1 // pred_check_branch
      %37 = sbr.rel (0) target = $region25
    $region24: #{tpu_custom_call.1} parent=1 // pred_region
      _
    $region25: #{tpu_custom_call.1} parent=1 // pred_fallthru
      _
    // Predicated region
    $region26: #{tpu_custom_call.1} parent=1 // pred_check
      _
    $region27: #{tpu_custom_call.1} parent=1 // pred_check_branch
      %39 = sbr.rel (0) target = $region29
    $region28: #{tpu_custom_call.1} parent=1 // pred_region
      _
    $region29: #{tpu_custom_call.1} parent=1 // pred_fallthru
      _
    // Predicated region
    $region30: #{tpu_custom_call.1} parent=1 // pred_check
      _
    $region31: #{tpu_custom_call.1} parent=1 // pred_check_branch
      %41 = sbr.rel (0) target = $region33
    $region32: #{tpu_custom_call.1} parent=1 // pred_region
      %43 = dma.done [#allocation4], 512
    $region33: #{tpu_custom_call.1} parent=1 // pred_fallthru
      _
    %v45 = vld [vmem:[%s0] sm:$0x3]
    %v46 = vpack.c.bf16 %v45, %v45
    %v47 = vld [vmem:[#allocation3] sm:$0xf]
    %v48 = vld [vmem:[#allocation3 + $0x4] sm:$0xf]
    %v49 = vld [vmem:[#allocation3 + $0x8] sm:$0xf]
    %v50 = vld [vmem:[#allocation3 + $0xc] sm:$0xf]
    %v51 = vld [vmem:[#allocation3 + $0x10] sm:$0xf]
    %v52 = vld [vmem:[#allocation3 + $0x14] sm:$0xf]
    %v53 = vld [vmem:[#allocation3 + $0x18] sm:$0xf]
    %v54 = vld [vmem:[#allocation3 + $0x1c] sm:$0xf]
    %v55 = vld [vmem:[%s2] sm:$0x1]
    %v57 = vperm.slane %v55, 0
    %v67 = vunpack.c.l.b16 %v47
    %v68 = vunpack.c.l.b16 %v48
    %v69 = vunpack.c.l.b16 %v49
    %v70 = vunpack.c.l.b16 %v50
    %v71 = vunpack.c.l.b16 %v51
    %v72 = vunpack.c.l.b16 %v52
    %v73 = vunpack.c.l.b16 %v53
    %v74 = vunpack.c.l.b16 %v54
    %v75 = vpack.c.b16 %v68, %v67
    %v76 = vpack.c.b16 %v70, %v69
    %v77 = vpack.c.b16 %v72, %v71
    %v78 = vpack.c.b16 %v74, %v73
    %vm83 = vcmask 523264
    %v85 = vsel %vm83, %v46, 0
    %87 = vmatpush.bf16.msra.mxu0 0
    %88 = vmatpush.bf16.msra.mxu0 0
    %89 = vmatpush.bf16.msra.mxu0 0
    %90 = vmatpush.bf16.msra.mxu0 0
    %91 = vmatpush.bf16.msra.mxu0 %v78
    %92 = vmatpush.bf16.msra.mxu0 %v77
    %93 = vmatpush.bf16.msra.mxu0 %v76
    %94 = vmatpush.bf16.msra.mxu0 %v75
    %95 = vmatmul.bf16.gmra.mxu0 %v85
    %v96 = vpop.f32.mrf.mxu0
    %v97 = vadd.f32 %v57, %v96
    %v98 = vpop.f32.mrf.mxu0
    %99 = vdwg.mxu0
    %v100 = vmax.f32 %v97, 0.0
    %v101 = vpack.c.bf16 %v100, %v100
    %v102 = vld [vmem:[%s3] sm:$0xf]
    %v103 = vld [vmem:[%s3 + $0x4] sm:$0xf]
    %v104 = vld [vmem:[%s3 + $0x8] sm:$0xf]
    %v105 = vld [vmem:[%s3 + $0xc] sm:$0xf]
    %v106 = vld [vmem:[%s3 + $0x10] sm:$0xf]
    %v107 = vld [vmem:[%s3 + $0x14] sm:$0xf]
    %v108 = vld [vmem:[%s3 + $0x18] sm:$0xf]
    %v109 = vld [vmem:[%s3 + $0x1c] sm:$0xf]
    %v110 = vld [vmem:[%s3 + $0x20] sm:$0xf]
    %v111 = vld [vmem:[%s3 + $0x24] sm:$0xf]
    %v112 = vld [vmem:[%s3 + $0x28] sm:$0xf]
    %v113 = vld [vmem:[%s3 + $0x2c] sm:$0xf]
    %v114 = vld [vmem:[%s3 + $0x30] sm:$0xf]
    %v115 = vld [vmem:[%s3 + $0x34] sm:$0xf]
    %v116 = vld [vmem:[%s3 + $0x38] sm:$0xf]
    %v117 = vld [vmem:[%s3 + $0x3c] sm:$0xf]
    %v118 = vld [vmem:[%s4] sm:$0x1]
    %v120 = vperm.slane %v118, 0
    %v138 = vunpack.c.l.b16 %v102
    %v139 = vunpack.c.l.b16 %v103
    %v140 = vunpack.c.l.b16 %v104
    %v141 = vunpack.c.l.b16 %v105
    %v142 = vunpack.c.l.b16 %v106
    %v143 = vunpack.c.l.b16 %v107
    %v144 = vunpack.c.l.b16 %v108
    %v145 = vunpack.c.l.b16 %v109
    %v146 = vunpack.c.l.b16 %v110
    %v147 = vunpack.c.l.b16 %v111
    %v148 = vunpack.c.l.b16 %v112
    %v149 = vunpack.c.l.b16 %v113
    %v150 = vunpack.c.l.b16 %v114
    %v151 = vunpack.c.l.b16 %v115
    %v152 = vunpack.c.l.b16 %v116
    %v153 = vunpack.c.l.b16 %v117
    %v154 = vpack.c.b16 %v139, %v138
    %v155 = vpack.c.b16 %v141, %v140
    %v156 = vpack.c.b16 %v143, %v142
    %v157 = vpack.c.b16 %v145, %v144
    %v158 = vpack.c.b16 %v147, %v146
    %v159 = vpack.c.b16 %v149, %v148
    %v160 = vpack.c.b16 %v151, %v150
    %v161 = vpack.c.b16 %v153, %v152
    %170 = vmatpush.bf16.msra.mxu0 %v161
    %171 = vmatpush.bf16.msra.mxu0 %v160
    %172 = vmatpush.bf16.msra.mxu0 %v159
    %173 = vmatpush.bf16.msra.mxu0 %v158
    %174 = vmatpush.bf16.msra.mxu0 %v157
    %175 = vmatpush.bf16.msra.mxu0 %v156
    %176 = vmatpush.bf16.msra.mxu0 %v155
    %177 = vmatpush.bf16.msra.mxu0 %v154
    %178 = vmatmul.bf16.gmra.mxu0 %v101
    %v179 = vpop.f32.mrf.mxu0
    %v180 = vadd.f32 %v120, %v179
    %v181 = vpop.f32.mrf.mxu0
    %182 = vdwg.mxu0
    %v183 = vmax.f32 %v180, 0.0
    %v184 = vpack.c.bf16 %v183, %v183
    %v185 = vld [vmem:[%s5] sm:$0xf]
    %v186 = vld [vmem:[%s5 + $0x4] sm:$0xf]
    %v187 = vld [vmem:[%s5 + $0x8] sm:$0xf]
    %v188 = vld [vmem:[%s5 + $0xc] sm:$0xf]
    %v189 = vld [vmem:[%s5 + $0x10] sm:$0xf]
    %v190 = vld [vmem:[%s5 + $0x14] sm:$0xf]
    %v191 = vld [vmem:[%s5 + $0x18] sm:$0xf]
    %v192 = vld [vmem:[%s5 + $0x1c] sm:$0xf]
    %v193 = vld [vmem:[%s5 + $0x20] sm:$0xf]
    %v194 = vld [vmem:[%s5 + $0x24] sm:$0xf]
    %v195 = vld [vmem:[%s5 + $0x28] sm:$0xf]
    %v196 = vld [vmem:[%s5 + $0x2c] sm:$0xf]
    %v197 = vld [vmem:[%s5 + $0x30] sm:$0xf]
    %v198 = vld [vmem:[%s5 + $0x34] sm:$0xf]
    %v199 = vld [vmem:[%s5 + $0x38] sm:$0xf]
    %v200 = vld [vmem:[%s5 + $0x3c] sm:$0xf]
    %s201 = sld [smem:[#allocation2]]
    %v202 = vstv %s201
    %v219 = vunpack.c.l.b16 %v185
    %v220 = vunpack.c.l.b16 %v186
    %v221 = vunpack.c.l.b16 %v187
    %v222 = vunpack.c.l.b16 %v188
    %v223 = vunpack.c.l.b16 %v189
    %v224 = vunpack.c.l.b16 %v190
    %v225 = vunpack.c.l.b16 %v191
    %v226 = vunpack.c.l.b16 %v192
    %v227 = vunpack.c.l.b16 %v193
    %v228 = vunpack.c.l.b16 %v194
    %v229 = vunpack.c.l.b16 %v195
    %v230 = vunpack.c.l.b16 %v196
    %v231 = vunpack.c.l.b16 %v197
    %v232 = vunpack.c.l.b16 %v198
    %v233 = vunpack.c.l.b16 %v199
    %v234 = vunpack.c.l.b16 %v200
    %v235 = vpack.c.b16 %v220, %v219
    %v236 = vpack.c.b16 %v222, %v221
    %v237 = vpack.c.b16 %v224, %v223
    %v238 = vpack.c.b16 %v226, %v225
    %v239 = vpack.c.b16 %v228, %v227
    %v240 = vpack.c.b16 %v230, %v229
    %v241 = vpack.c.b16 %v232, %v231
    %v242 = vpack.c.b16 %v234, %v233
    %251 = vmatpush.bf16.msra.mxu0 %v242
    %252 = vmatpush.bf16.msra.mxu0 %v241
    %253 = vmatpush.bf16.msra.mxu0 %v240
    %254 = vmatpush.bf16.msra.mxu0 %v239
    %255 = vmatpush.bf16.msra.mxu0 %v238
    %256 = vmatpush.bf16.msra.mxu0 %v237
    %257 = vmatpush.bf16.msra.mxu0 %v236
    %258 = vmatpush.bf16.msra.mxu0 %v235
    %259 = vmatmul.bf16.gmra.mxu0 %v184
    %v260 = vpop.f32.mrf.mxu0
    %v261 = vadd.f32 %v202, %v260
    %v262 = vpop.f32.mrf.mxu0
    %263 = vdwg.mxu0
    %vm264 = vcmask 25600
    %265 = vst.msk [vmem:[#allocation6] sm:$0x3] %vm264, %v261
    // Predicated region
    $region34: #{tpu_custom_call.1} parent=1 // pred_check
      _
    $region35: #{tpu_custom_call.1} parent=1 // pred_check_branch
      %267 = sbr.rel (0) target = $region37
    $region36: #{tpu_custom_call.1} parent=1 // pred_region
      %269 = vsyncadd [#allocation5], 0
      %s271 = sshll.u32 [#allocation6], 4
      %s272 = int_to_ptr.vmem [resolvable:$true] %s271
      %s273 = sshll.u32 %s7, 4
      %s274 = int_to_ptr.hbm [resolvable:$true] %s273
      %276 = dma.vmem_to_hbm [thread:$0]  %s272, 32, %s274, [#allocation5]
    $region37: #{tpu_custom_call.1} parent=1 // pred_fallthru
      _
    // Predicated region
    $region38: #{tpu_custom_call.1} parent=1 // pred_check
      _
    $region39: #{tpu_custom_call.1} parent=1 // pred_check_branch
      %278 = sbr.rel (0) target = $region41
    $region40: #{tpu_custom_call.1} parent=1 // pred_region
      %280 = dma.done [#allocation5], 32
    $region41: #{tpu_custom_call.1} parent=1 // pred_fallthru
      _
    %281 = vsyncpa [#allocation4], 1
    %282 = vsyncpa [#allocation5], 1

</llo_original>
